<compile_context>
chip_gen: v7x
topology: tpu7x:2x2x1
jax: 0.10.0
libtpu: 0.0.40
codegen_flags: <defaults>
</compile_context>

<pallas_src>
import functools

import jax
import jax.numpy as jnp
import numpy as np
from jax.experimental import pallas as pl
from jax.experimental.pallas import tpu as pltpu

LANE = 128


def _round_up(x, m):
    return ((x + m - 1) // m) * m


# ---------------------------------------------------------------------------
# Kernel (module-level; `limit` bound via functools.partial, not a per-call closure)
# ---------------------------------------------------------------------------
def actor_kernel(x_ref,
                 w1_ref, b1_ref,
                 w2_ref, b2_ref,
                 w3_ref, b3_ref,
                 w4_ref, b4_ref,
                 o_ref, *, limit):
    # x arrives already in bf16 ([tile, n_state], n_state unpadded -> MXU pads K).
    x = x_ref[...]
    # Layer 1: Linear(n_state, 256) + ReLU   (bf16 operands, f32 accumulation)
    h = jnp.dot(x, w1_ref[...], preferred_element_type=jnp.float32) + b1_ref[...]
    h = jnp.maximum(h, 0.0)
    # Layer 2: Linear(256, 128) + ReLU
    h = jnp.dot(h.astype(jnp.bfloat16), w2_ref[...],
                preferred_element_type=jnp.float32) + b2_ref[...]
    h = jnp.maximum(h, 0.0)
    # Layer 3: Linear(128, 64 -> padded 128) + ReLU (padded lanes stay exactly 0)
    h = jnp.dot(h.astype(jnp.bfloat16), w3_ref[...],
                preferred_element_type=jnp.float32) + b3_ref[...]
    h = jnp.maximum(h, 0.0)
    # Output: Linear(64, n_action -> padded 128), tanh, scale by limit; store bf16.
    out = jnp.dot(h.astype(jnp.bfloat16), w4_ref[...],
                  preferred_element_type=jnp.float32) + b4_ref[...]
    o_ref[...] = (jnp.tanh(out) * limit).astype(o_ref.dtype)


# ---------------------------------------------------------------------------
# One-time parameter preparation (call once, reuse for every forward)
# ---------------------------------------------------------------------------
def prepare_actor_params(params):
    """Pad output-feature dims to 128 lanes and cast weights to bf16 (ONCE).

    The contraction dim of layer 1 (n_state) is deliberately NOT padded: the MXU
    pads K internally and keeping x at [B, n_state] avoids 8x input DMA inflation.
    Biases stay float32 (added after f32 accumulation); padded bias entries are
    zero, so padded lanes carry exactly 0 through ReLU / tanh.
    """
    def pad2(a, rows, cols, dtype):
        r, c = a.shape
        return jnp.pad(a, ((0, rows - r), (0, cols - c))).astype(dtype)

    n_state, h1 = params["w1"].shape
    h2 = params["w2"].shape[1]
    h3 = params["w3"].shape[1]
    n_action = params["w4"].shape[1]

    h1_p = _round_up(h1, LANE)        # 256
    h2_p = _round_up(h2, LANE)        # 128
    h3_p = _round_up(h3, LANE)        # 64 -> 128
    na_p = _round_up(n_action, LANE)  # n_action -> 128

    return {
        "w1": pad2(params["w1"], n_state, h1_p, jnp.bfloat16),
        "b1": pad2(params["b1"], 1, h1_p, jnp.float32),
        "w2": pad2(params["w2"], h1_p, h2_p, jnp.bfloat16),
        "b2": pad2(params["b2"], 1, h2_p, jnp.float32),
        "w3": pad2(params["w3"], h2_p, h3_p, jnp.bfloat16),
        "b3": pad2(params["b3"], 1, h3_p, jnp.float32),
        "w4": pad2(params["w4"], h3_p, na_p, jnp.bfloat16),
        "b4": pad2(params["b4"], 1, na_p, jnp.float32),
    }


def _choose_tile(B, batch_tile):
    """Batch tile: multiple of 16 (bf16 sublane tiling), capped at batch_tile,
    and split so the grid has >= 2 steps whenever B > 16 (v7x megacore)."""
    tile = min(batch_tile, _round_up(B, 16))
    if B > 16:
        tile = min(tile, _round_up((B + 1) // 2, 16))
    return max(tile, 16)


# ---------------------------------------------------------------------------
# Jitted forward pass
# ---------------------------------------------------------------------------
@functools.partial(jax.jit, static_argnames=("limit", "n_action", "batch_tile"))
def actor_forward(state, prepared, *, limit, n_action, batch_tile=1024):
    """state: [B, n_state] float32. prepared: output of prepare_actor_params()."""
    B, n_state = state.shape
    tile = _choose_tile(B, batch_tile)
    B_pad = _round_up(B, tile)

    # bf16 input: halves input DMA bytes and removes the in-kernel cast.
    x = state.astype(jnp.bfloat16)
    if B_pad != B:
        x = jnp.pad(x, ((0, B_pad - B), (0, 0)))

    w1, b1 = prepared["w1"], prepared["b1"]
    w2, b2 = prepared["w2"], prepared["b2"]
    w3, b3 = prepared["w3"], prepared["b3"]
    w4, b4 = prepared["w4"], prepared["b4"]
    na_p = w4.shape[1]

    grid = (B_pad // tile,)

    # Weights/biases are small (~100 KB bf16 total); replicate them to every grid
    # step with a constant block index so they are DMA'd only once.
    # (pl.Buffered(1) on these specs was considered but omitted: double-buffering
    #  them costs only ~200 KB VMEM and the plain path is known-good.)
    def rep(a):
        return pl.BlockSpec(a.shape, lambda i: (0, 0))

    out = pl.pallas_call(
        functools.partial(actor_kernel, limit=float(limit)),
        out_shape=jax.ShapeDtypeStruct((B_pad, na_p), jnp.bfloat16),
        grid_spec=pltpu.PrefetchScalarGridSpec(
            num_scalar_prefetch=0,
            grid=grid,
            in_specs=[
                pl.BlockSpec((tile, n_state), lambda i: (i, 0)),  # state tile (bf16)
                rep(w1), rep(b1),
                rep(w2), rep(b2),
                rep(w3), rep(b3),
                rep(w4), rep(b4),
            ],
            # Lane-dense (128-wide) bf16 output store; the narrow (tile, n_action)
            # store variant trades masked vst vs. 32x fewer bytes -- kept lane-dense.
            out_specs=pl.BlockSpec((tile, na_p), lambda i: (i, 0)),
        ),
        compiler_params=pltpu.CompilerParams(
            dimension_semantics=("parallel",)),
    )(x, w1, b1, w2, b2, w3, b3, w4, b4)

    # Drop batch padding + action-lane padding; return f32 for callers.
    return out[:B, :n_action].astype(jnp.float32)


# ---------------------------------------------------------------------------
# Init + reference (matching the PyTorch module)
# ---------------------------------------------------------------------------
def init_actor_params(key, n_state, n_action):
    """Deterministic init matching the PyTorch module's scheme.

    PyTorch Linear weight is (out, in); here we store the transpose (in, out) so
    the kernel computes x @ W + b. Hidden-layer weights use U(-1/sqrt(in), 1/sqrt(in));
    the output-layer weight uses U(-0.003, 0.003). Biases keep PyTorch's default
    U(-1/sqrt(fan_in), 1/sqrt(fan_in)) (the original module does not override them).
    """
    def uniform_weights(k, in_dim, out_dim, bound=None):
        bound = bound if bound is not None else 1.0 / np.sqrt(in_dim)
        kw, kb = jax.random.split(k)
        w = jax.random.uniform(kw, (in_dim, out_dim), jnp.float32, -bound, bound)
        b_bound = 1.0 / np.sqrt(in_dim)
        b = jax.random.uniform(kb, (1, out_dim), jnp.float32, -b_bound, b_bound)
        return w, b

    k1, k2, k3, k4 = jax.random.split(key, 4)
    w1, b1 = uniform_weights(k1, n_state, 256)
    w2, b2 = uniform_weights(k2, 256, 128)
    w3, b3 = uniform_weights(k3, 128, 64)
    w4, b4 = uniform_weights(k4, 64, n_action, bound=0.003)
    return {"w1": w1, "b1": b1, "w2": w2, "b2": b2,
            "w3": w3, "b3": b3, "w4": w4, "b4": b4}


def actor_reference(state, params, limit):
    """Pure-JAX reference with the same bf16-operand / f32-accumulate numerics."""
    def layer(x, w, b):
        return jnp.dot(x.astype(jnp.bfloat16), w.astype(jnp.bfloat16),
                       preferred_element_type=jnp.float32) + b
    h = jnp.maximum(layer(state, params["w1"], params["b1"]), 0.0)
    h = jnp.maximum(layer(h, params["w2"], params["b2"]), 0.0)
    h = jnp.maximum(layer(h, params["w3"], params["b3"]), 0.0)
    return jnp.tanh(layer(h, params["w4"], params["b4"])) * limit


if __name__ == "__main__":
    n_state, n_action = 16, 4
    limit = 2.0

    key = jax.random.PRNGKey(0)
    k_params, k_small, k_big = jax.random.split(key, 3)
    params = init_actor_params(k_params, n_state, n_action)

    # Hoisted out of the hot path: pad/cast the weights exactly once.
    prepared = prepare_actor_params(params)

    # Small batch: single 16-row tile, one grid step.
    state_small = jax.random.normal(k_small, (8, n_state), dtype=jnp.float32)
    out_small = jax.block_until_ready(
        actor_forward(state_small, prepared, limit=limit, n_action=n_action))
    ref_small = actor_reference(state_small, params, limit)
    np.testing.assert_allclose(np.asarray(out_small), np.asarray(ref_small),
                               rtol=2e-2, atol=2e-2)

    # Larger batch: tile=256, grid of 2 steps (v7x megacore path), bf16 in/out.
    state_big = jax.random.normal(k_big, (512, n_state), dtype=jnp.float32)
    out_big = jax.block_until_ready(
        actor_forward(state_big, prepared, limit=limit, n_action=n_action))
    ref_big = actor_reference(state_big, params, limit)
    np.testing.assert_allclose(np.asarray(out_big), np.asarray(ref_big),
                               rtol=2e-2, atol=2e-2)

    # Second call with the same shape hits the jit cache (no re-prep, no re-trace).
    jax.block_until_ready(
        actor_forward(state_big, prepared, limit=limit, n_action=n_action))

    print("KERNEL_OK")
</pallas_src>

<mosaic_0001>
module attributes {stable_mosaic.version = 11 : i64} {
  func.func @actor_kernel(%arg0: i32, %arg1: memref<16x16xbf16, #tpu.memory_space<vmem>>, %arg2: memref<16x256xbf16, #tpu.memory_space<vmem>>, %arg3: memref<1x256xf32, #tpu.memory_space<vmem>>, %arg4: memref<256x128xbf16, #tpu.memory_space<vmem>>, %arg5: memref<1x128xf32, #tpu.memory_space<vmem>>, %arg6: memref<128x128xbf16, #tpu.memory_space<vmem>>, %arg7: memref<1x128xf32, #tpu.memory_space<vmem>>, %arg8: memref<128x128xbf16, #tpu.memory_space<vmem>>, %arg9: memref<1x128xf32, #tpu.memory_space<vmem>>, %arg10: memref<16x128xbf16, #tpu.memory_space<vmem>>) attributes {dimension_semantics = [#tpu.dimension_semantics<parallel>], iteration_bounds = array<i64: 1>, scalar_prefetch = 0 : i64, scratch_operands = 0 : i64, tpu.core_type = #tpu.core_type<tc>, window_params = [{transform_indices = @transform_0, window_bounds = array<i64: 16, 16>}, {pipeline_mode = #tpu.pipeline_mode<synchronous>, transform_indices = @transform_1, window_bounds = array<i64: 16, 256>}, {pipeline_mode = #tpu.pipeline_mode<synchronous>, transform_indices = @transform_2, window_bounds = array<i64: 1, 256>}, {pipeline_mode = #tpu.pipeline_mode<synchronous>, transform_indices = @transform_3, window_bounds = array<i64: 256, 128>}, {pipeline_mode = #tpu.pipeline_mode<synchronous>, transform_indices = @transform_4, window_bounds = array<i64: 1, 128>}, {pipeline_mode = #tpu.pipeline_mode<synchronous>, transform_indices = @transform_5, window_bounds = array<i64: 128, 128>}, {pipeline_mode = #tpu.pipeline_mode<synchronous>, transform_indices = @transform_6, window_bounds = array<i64: 1, 128>}, {pipeline_mode = #tpu.pipeline_mode<synchronous>, transform_indices = @transform_7, window_bounds = array<i64: 128, 128>}, {pipeline_mode = #tpu.pipeline_mode<synchronous>, transform_indices = @transform_8, window_bounds = array<i64: 1, 128>}, {transform_indices = @transform_9, window_bounds = array<i64: 16, 128>}]} {
    %c0 = arith.constant 0 : index
    %c0_0 = arith.constant 0 : index
    %0 = vector.load %arg1[%c0, %c0_0] : memref<16x16xbf16, #tpu.memory_space<vmem>>, vector<16x16xbf16>
    %c0_1 = arith.constant 0 : index
    %c0_2 = arith.constant 0 : index
    %1 = vector.load %arg2[%c0_1, %c0_2] : memref<16x256xbf16, #tpu.memory_space<vmem>>, vector<16x256xbf16>
    %cst = arith.constant dense<0.000000e+00> : vector<16x256xf32>
    %2 = tpu.matmul %0, %1, %cst {dimension_numbers = #tpu.dot_dimension_numbers<[1], [0], [0], [1], [0, 0, 1, 1], [], []>} : vector<16x16xbf16>, vector<16x256xbf16>, vector<16x256xf32> -> vector<16x256xf32>
    %c0_3 = arith.constant 0 : index
    %c0_4 = arith.constant 0 : index
    %3 = vector.load %arg3[%c0_3, %c0_4] : memref<1x256xf32, #tpu.memory_space<vmem>>, vector<1x256xf32>
    %4 = vector.broadcast %3 : vector<1x256xf32> to vector<16x256xf32>
    %5 = arith.addf %2, %4 : vector<16x256xf32>
    %cst_5 = arith.constant 0.000000e+00 : f32
    %6 = vector.broadcast %cst_5 : f32 to vector<16x256xf32>
    %7 = arith.maximumf %5, %6 : vector<16x256xf32>
    %8 = arith.truncf %7 : vector<16x256xf32> to vector<16x256xbf16>
    %c0_6 = arith.constant 0 : index
    %c0_7 = arith.constant 0 : index
    %9 = vector.load %arg4[%c0_6, %c0_7] : memref<256x128xbf16, #tpu.memory_space<vmem>>, vector<256x128xbf16>
    %cst_8 = arith.constant dense<0.000000e+00> : vector<16x128xf32>
    %10 = tpu.matmul %8, %9, %cst_8 {dimension_numbers = #tpu.dot_dimension_numbers<[1], [0], [0], [1], [0, 0, 1, 1], [], []>} : vector<16x256xbf16>, vector<256x128xbf16>, vector<16x128xf32> -> vector<16x128xf32>
    %c0_9 = arith.constant 0 : index
    %c0_10 = arith.constant 0 : index
    %11 = vector.load %arg5[%c0_9, %c0_10] : memref<1x128xf32, #tpu.memory_space<vmem>>, vector<1x128xf32>
    %12 = vector.broadcast %11 : vector<1x128xf32> to vector<16x128xf32>
    %13 = arith.addf %10, %12 : vector<16x128xf32>
    %cst_11 = arith.constant 0.000000e+00 : f32
    %14 = vector.broadcast %cst_11 : f32 to vector<16x128xf32>
    %15 = arith.maximumf %13, %14 : vector<16x128xf32>
    %16 = arith.truncf %15 : vector<16x128xf32> to vector<16x128xbf16>
    %c0_12 = arith.constant 0 : index
    %c0_13 = arith.constant 0 : index
    %17 = vector.load %arg6[%c0_12, %c0_13] : memref<128x128xbf16, #tpu.memory_space<vmem>>, vector<128x128xbf16>
    %cst_14 = arith.constant dense<0.000000e+00> : vector<16x128xf32>
    %18 = tpu.matmul %16, %17, %cst_14 {dimension_numbers = #tpu.dot_dimension_numbers<[1], [0], [0], [1], [0, 0, 1, 1], [], []>} : vector<16x128xbf16>, vector<128x128xbf16>, vector<16x128xf32> -> vector<16x128xf32>
    %c0_15 = arith.constant 0 : index
    %c0_16 = arith.constant 0 : index
    %19 = vector.load %arg7[%c0_15, %c0_16] : memref<1x128xf32, #tpu.memory_space<vmem>>, vector<1x128xf32>
    %20 = vector.broadcast %19 : vector<1x128xf32> to vector<16x128xf32>
    %21 = arith.addf %18, %20 : vector<16x128xf32>
    %cst_17 = arith.constant 0.000000e+00 : f32
    %22 = vector.broadcast %cst_17 : f32 to vector<16x128xf32>
    %23 = arith.maximumf %21, %22 : vector<16x128xf32>
    %24 = arith.truncf %23 : vector<16x128xf32> to vector<16x128xbf16>
    %c0_18 = arith.constant 0 : index
    %c0_19 = arith.constant 0 : index
    %25 = vector.load %arg8[%c0_18, %c0_19] : memref<128x128xbf16, #tpu.memory_space<vmem>>, vector<128x128xbf16>
    %cst_20 = arith.constant dense<0.000000e+00> : vector<16x128xf32>
    %26 = tpu.matmul %24, %25, %cst_20 {dimension_numbers = #tpu.dot_dimension_numbers<[1], [0], [0], [1], [0, 0, 1, 1], [], []>} : vector<16x128xbf16>, vector<128x128xbf16>, vector<16x128xf32> -> vector<16x128xf32>
    %c0_21 = arith.constant 0 : index
    %c0_22 = arith.constant 0 : index
    %27 = vector.load %arg9[%c0_21, %c0_22] : memref<1x128xf32, #tpu.memory_space<vmem>>, vector<1x128xf32>
    %28 = vector.broadcast %27 : vector<1x128xf32> to vector<16x128xf32>
    %29 = arith.addf %26, %28 : vector<16x128xf32>
    %30 = math.tanh %29 : vector<16x128xf32>
    %cst_23 = arith.constant 2.000000e+00 : f32
    %31 = vector.broadcast %cst_23 : f32 to vector<16x128xf32>
    %32 = arith.mulf %30, %31 : vector<16x128xf32>
    %33 = arith.truncf %32 : vector<16x128xf32> to vector<16x128xbf16>
    %c0_24 = arith.constant 0 : index
    %c0_25 = arith.constant 0 : index
    %34 = vector.load %arg10[%c0_24, %c0_25] : memref<16x128xbf16, #tpu.memory_space<vmem>>, vector<16x128xbf16>
    tpu.vector_store %arg10[%c0_24, %c0_25], %33 {strides = array<i32>} : memref<16x128xbf16, #tpu.memory_space<vmem>>, vector<16x128xbf16>,
    return
  }
  func.func @transform_0(%arg0: i32) -> (i32, i32) {
    %c0_i32 = arith.constant 0 : i32
    %c0_i32_0 = arith.constant 0 : i32
    return %arg0, %c0_i32 : i32, i32
  }
  func.func @transform_1(%arg0: i32) -> (i32, i32) {
    %c0_i32 = arith.constant 0 : i32
    %c0_i32_0 = arith.constant 0 : i32
    %c0_i32_1 = arith.constant 0 : i32
    return %c0_i32, %c0_i32_0 : i32, i32
  }
  func.func @transform_2(%arg0: i32) -> (i32, i32) {
    %c0_i32 = arith.constant 0 : i32
    %c0_i32_0 = arith.constant 0 : i32
    %c0_i32_1 = arith.constant 0 : i32
    return %c0_i32, %c0_i32_0 : i32, i32
  }
  func.func @transform_3(%arg0: i32) -> (i32, i32) {
    %c0_i32 = arith.constant 0 : i32
    %c0_i32_0 = arith.constant 0 : i32
    %c0_i32_1 = arith.constant 0 : i32
    return %c0_i32, %c0_i32_0 : i32, i32
  }
  func.func @transform_4(%arg0: i32) -> (i32, i32) {
    %c0_i32 = arith.constant 0 : i32
    %c0_i32_0 = arith.constant 0 : i32
    %c0_i32_1 = arith.constant 0 : i32
    return %c0_i32, %c0_i32_0 : i32, i32
  }
  func.func @transform_5(%arg0: i32) -> (i32, i32) {
    %c0_i32 = arith.constant 0 : i32
    %c0_i32_0 = arith.constant 0 : i32
    %c0_i32_1 = arith.constant 0 : i32
    return %c0_i32, %c0_i32_0 : i32, i32
  }
  func.func @transform_6(%arg0: i32) -> (i32, i32) {
    %c0_i32 = arith.constant 0 : i32
    %c0_i32_0 = arith.constant 0 : i32
    %c0_i32_1 = arith.constant 0 : i32
    return %c0_i32, %c0_i32_0 : i32, i32
  }
  func.func @transform_7(%arg0: i32) -> (i32, i32) {
    %c0_i32 = arith.constant 0 : i32
    %c0_i32_0 = arith.constant 0 : i32
    %c0_i32_1 = arith.constant 0 : i32
    return %c0_i32, %c0_i32_0 : i32, i32
  }
  func.func @transform_8(%arg0: i32) -> (i32, i32) {
    %c0_i32 = arith.constant 0 : i32
    %c0_i32_0 = arith.constant 0 : i32
    %c0_i32_1 = arith.constant 0 : i32
    return %c0_i32, %c0_i32_0 : i32, i32
  }
  func.func @transform_9(%arg0: i32) -> (i32, i32) {
    %c0_i32 = arith.constant 0 : i32
    %c0_i32_0 = arith.constant 0 : i32
    return %arg0, %c0_i32 : i32, i32
  }
}

</mosaic_0001>

<llo_original>
// kernel: actor_forward.1
$region0: #{actor_forward.1}
  #allocation0 [shape = 'u32[]', space=smem, size = 0x4, offset = 0x4, fixed_abs, tag = 'smem constant byte address 0x4 - core index']
  #allocation1 [shape = 'u32[144,128]{1,0:T(1,128)}', space=vmem, size = 0x12000, scoped, tag = 'internal scratch']
  %s0 = inlined_call_operand.vmem [shape: bf16[16,16], index: 0, kind: input, shape index: {}]
  %s1 = inlined_call_operand.vmem [shape: bf16[16,256], index: 1, kind: input, shape index: {}]
  %s2 = inlined_call_operand.vmem [shape: f32[1,256], index: 2, kind: input, shape index: {}]
  %s3 = inlined_call_operand.hbm [shape: bf16[256,128], index: 3, kind: input, shape index: {}]
  %s4 = inlined_call_operand.vmem [shape: f32[1,128], index: 4, kind: input, shape index: {}]
  %s5 = inlined_call_operand.hbm [shape: bf16[128,128], index: 5, kind: input, shape index: {}]
  %s6 = inlined_call_operand.vmem [shape: f32[1,128], index: 6, kind: input, shape index: {}]
  %s7 = inlined_call_operand.hbm [shape: bf16[128,128], index: 7, kind: input, shape index: {}]
  %s8 = inlined_call_operand.vmem [shape: f32[1,128], index: 8, kind: input, shape index: {}]
  %s9 = inlined_call_operand.vmem [shape: bf16[16,128], index: 9, kind: output, shape index: {}]
  %s10 = sld [smem:[#allocation0]]
  $region58: #{actor_forward.1} parent=0
    _
  %s12 = ssub.s32 1, %s10
  %s13 = scalar_select 0, %s12, %s10
  $region1: #{actor_forward.1} parent=0
    #allocation2 [shape = 'u8[65536]{0}', space=vmem, size = 0x10000, scoped, tag = 'input window, operand 3, single buffered']
    #allocation3 [shape = 's32[1]{0}', space=sflag, size = 0x4, scoped, tag = 'scoped memory for actor_forward.1']
    #allocation4 [shape = 'u8[32768]{0}', space=vmem, size = 0x8000, scoped, tag = 'input window, operand 5, single buffered']
    #allocation5 [shape = 's32[1]{0}', space=sflag, size = 0x4, scoped, tag = 'scoped memory for actor_forward.1']
    #allocation6 [shape = 'u8[32768]{0}', space=vmem, size = 0x8000, scoped, tag = 'input window, operand 7, single buffered']
    %14 = vsyncpa [#allocation3], 0
    %15 = vsyncpa [#allocation5], 0
    // Predicated region
    $region2: #{actor_forward.1} parent=1 // pred_check
      _
    $region3: #{actor_forward.1} parent=1 // pred_check_branch
      %17 = sbr.rel (0) target = $region5
    $region4: #{actor_forward.1} parent=1 // pred_region
      _
    $region5: #{actor_forward.1} parent=1 // pred_fallthru
      _
    // Predicated region
    $region6: #{actor_forward.1} parent=1 // pred_check
      _
    $region7: #{actor_forward.1} parent=1 // pred_check_branch
      %19 = sbr.rel (0) target = $region9
    $region8: #{actor_forward.1} parent=1 // pred_region
      _
    $region9: #{actor_forward.1} parent=1 // pred_fallthru
      _
    // Predicated region
    $region10: #{actor_forward.1} parent=1 // pred_check
      _
    $region11: #{actor_forward.1} parent=1 // pred_check_branch
      %21 = sbr.rel (0) target = $region13
    $region12: #{actor_forward.1} parent=1 // pred_region
      _
    $region13: #{actor_forward.1} parent=1 // pred_fallthru
      _
    // Predicated region
    $region14: #{actor_forward.1} parent=1 // pred_check
      _
    $region15: #{actor_forward.1} parent=1 // pred_check_branch
      %23 = sbr.rel (0) target = $region17
    $region16: #{actor_forward.1} parent=1 // pred_region
      %s25 = ssub.s32 2048, 2048
      %26 = vsyncadd [#allocation3], %s25
      %s27 = sshll.u32 [#allocation2], 4
      %s28 = int_to_ptr.vmem [resolvable:$true] %s27
      %33 = dma.hbm_to_vmem [thread:$0]  %s3, 2048, %s28, [#allocation3], 64, 64, 4
    $region17: #{actor_forward.1} parent=1 // pred_fallthru
      _
    // Predicated region
    $region18: #{actor_forward.1} parent=1 // pred_check
      _
    $region19: #{actor_forward.1} parent=1 // pred_check_branch
      %35 = sbr.rel (0) target = $region21
    $region20: #{actor_forward.1} parent=1 // pred_region
      _
    $region21: #{actor_forward.1} parent=1 // pred_fallthru
      _
    // Predicated region
    $region22: #{actor_forward.1} parent=1 // pred_check
      _
    $region23: #{actor_forward.1} parent=1 // pred_check_branch
      %37 = sbr.rel (0) target = $region25
    $region24: #{actor_forward.1} parent=1 // pred_region
      %s39 = ssub.s32 1024, 1024
      %40 = vsyncadd [#allocation5], %s39
      %s41 = sshll.u32 [#allocation4], 4
      %s42 = int_to_ptr.vmem [resolvable:$true] %s41
      %47 = dma.hbm_to_vmem [thread:$0]  %s5, 1024, %s42, [#allocation5], 64, 64, 4
    $region25: #{actor_forward.1} parent=1 // pred_fallthru
      _
    // Predicated region
    $region26: #{actor_forward.1} parent=1 // pred_check
      _
    $region27: #{actor_forward.1} parent=1 // pred_check_branch
      %49 = sbr.rel (0) target = $region29
    $region28: #{actor_forward.1} parent=1 // pred_region
      _
    $region29: #{actor_forward.1} parent=1 // pred_fallthru
      _
    // Predicated region
    $region30: #{actor_forward.1} parent=1 // pred_check
      _
    $region31: #{actor_forward.1} parent=1 // pred_check_branch
      %51 = sbr.rel (0) target = $region33
    $region32: #{actor_forward.1} parent=1 // pred_region
      %s53 = ssub.s32 1024, 1024
      %54 = vsyncadd [#allocation5], %s53
      %s55 = sshll.u32 [#allocation6], 4
      %s56 = int_to_ptr.vmem [resolvable:$true] %s55
      %61 = dma.hbm_to_vmem [thread:$0]  %s7, 1024, %s56, [#allocation5], 64, 64, 4
    $region33: #{actor_forward.1} parent=1 // pred_fallthru
      _
    // Predicated region
    $region34: #{actor_forward.1} parent=1 // pred_check
      _
    $region35: #{actor_forward.1} parent=1 // pred_check_branch
      %63 = sbr.rel (0) target = $region37
    $region36: #{actor_forward.1} parent=1 // pred_region
      _
    $region37: #{actor_forward.1} parent=1 // pred_fallthru
      _
    // Predicated region
    $region38: #{actor_forward.1} parent=1 // pred_check
      _
    $region39: #{actor_forward.1} parent=1 // pred_check_branch
      %65 = sbr.rel (0) target = $region41
    $region40: #{actor_forward.1} parent=1 // pred_region
      %66 = dma.done [#allocation3], 2048
    $region41: #{actor_forward.1} parent=1 // pred_fallthru
      _
    // Predicated region
    $region42: #{actor_forward.1} parent=1 // pred_check
      _
    $region43: #{actor_forward.1} parent=1 // pred_check_branch
      %68 = sbr.rel (0) target = $region45
    $region44: #{actor_forward.1} parent=1 // pred_region
      %69 = dma.done [#allocation5], 1024
    $region45: #{actor_forward.1} parent=1 // pred_fallthru
      _
    // Predicated region
    $region46: #{actor_forward.1} parent=1 // pred_check
      _
    $region47: #{actor_forward.1} parent=1 // pred_check_branch
      %71 = sbr.rel (0) target = $region49
    $region48: #{actor_forward.1} parent=1 // pred_region
      %72 = dma.done [#allocation5], 1024
    $region49: #{actor_forward.1} parent=1 // pred_fallthru
      _
    %v74 = vld [vmem:[%s0] sm:$0xf]
    %v75 = vld [vmem:[%s0 + $0x4] sm:$0xf]
    %v76 = vld [vmem:[%s1] sm:$0xff]
    %v77 = vld [vmem:[%s1 + $0x8] sm:$0xff]
    %v78 = vld [vmem:[%s2] sm:$0x3]
    %v80 = vlaneseq
    %v81 = vshrl.u32 %v80, 7
    %v82 = vsub.s32 0, %v81
    %v83 = vrot.slane %v78, %v82
    %v84 = vlaneseq
    %v85 = vshrl.u32 %v84, 7
    %v86 = vsub.s32 1, %v85
    %v87 = vrot.slane %v78, %v86
    %v92 = vunpack.c.l.b16 %v74
    %v93 = vunpack.c.l.b16 %v75
    %v94 = vpack.c.b16 %v93, %v92
    %v97 = vunpack.c.l.b16 %v76
    %v98 = vunpack.c.h.b16 %v76
    %v99 = vunpack.c.l.b16 %v77
    %v100 = vunpack.c.h.b16 %v77
    %v101 = vpack.c.b16 %v99, %v97
    %v102 = vpack.c.b16 %v100, %v98
    %vm105 = vcmask 130048
    %v107 = vsel %vm105, %v94, 0
    %109 = vmatprep.subr.bf16.mxu0 %v102
    %110 = vmatpush1.bf16.msra.mxu0 %v101
    %111 = vmatprep.subr.bf16.mxu0 0
    %112 = vmatpush1.bf16.msra.mxu0 0
    %113 = vmatprep.subr.bf16.mxu0 0
    %114 = vmatpush1.bf16.msra.mxu0 0
    %115 = vmatprep.subr.bf16.mxu0 0
    %116 = vmatpush1.bf16.msra.mxu0 0
    %117 = vmatprep.subr.bf16.mxu0 0
    %118 = vmatpush1.bf16.msra.mxu0 0
    %119 = vmatprep.subr.bf16.mxu0 0
    %120 = vmatpush1.bf16.msra.mxu0 0
    %121 = vmatprep.subr.bf16.mxu0 0
    %122 = vmatpush1.bf16.msra.mxu0 0
    %123 = vmatprep.subr.bf16.mxu0 0
    %124 = vmatpush1.bf16.msra.mxu0 0
    %125 = vmatprep.subr.bf16.mxu0 0
    %126 = vmatpush1.bf16.msra.mxu0 0
    %127 = vmatprep.subr.bf16.mxu0 0
    %128 = vmatpush1.bf16.msra.mxu0 0
    %129 = vmatprep.subr.bf16.mxu0 0
    %130 = vmatpush1.bf16.msra.mxu0 0
    %131 = vmatprep.subr.bf16.mxu0 0
    %132 = vmatpush1.bf16.msra.mxu0 0
    %133 = vmatprep.subr.bf16.mxu0 0
    %134 = vmatpush1.bf16.msra.mxu0 0
    %135 = vmatprep.subr.bf16.mxu0 0
    %136 = vmatpush1.bf16.msra.mxu0 0
    %137 = vmatprep.subr.bf16.mxu0 0
    %138 = vmatpush1.bf16.msra.mxu0 0
    %139 = vmatprep.subr.bf16.mxu0 0
    %140 = vmatpush1.bf16.msra.mxu0 0
    %141 = vmatprep.mubr.bf16.mxu0 0
    %142 = vmatmul.mubr.bf16.gmra.mrb[0].mxu0 %v107
    %v143 = vpop.f32.mrb[0].mxu0
    %v144 = vadd.f32 %v83, %v143
    %v145 = vpop.f32.mrb[0].mxu0
    %v146 = vadd.f32 %v87, %v145
    %v147 = vpop.f32.mrb[0].mxu0
    %v148 = vadd.f32 %v83, %v147
    %v149 = vpop.f32.mrb[0].mxu0
    %v150 = vadd.f32 %v87, %v149
    %151 = vdwg.mxu0
    %v152 = vmax.f32 %v144, 0.0
    %v153 = vmax.f32 %v146, 0.0
    %v154 = vmax.f32 %v148, 0.0
    %v155 = vmax.f32 %v150, 0.0
    %v156 = vpack.c.bf16 %v154, %v152
    %v157 = vpack.c.bf16 %v155, %v153
    %v158 = vld [vmem:[#allocation2] sm:$0xf]
    %v159 = vld [vmem:[#allocation2 + $0x4] sm:$0xf]
    %v160 = vld [vmem:[#allocation2 + $0x8] sm:$0xf]
    %v161 = vld [vmem:[#allocation2 + $0xc] sm:$0xf]
    %v162 = vld [vmem:[#allocation2 + $0x10] sm:$0xf]
    %v163 = vld [vmem:[#allocation2 + $0x14] sm:$0xf]
    %v164 = vld [vmem:[#allocation2 + $0x18] sm:$0xf]
    %v165 = vld [vmem:[#allocation2 + $0x1c] sm:$0xf]
    %v166 = vld [vmem:[#allocation2 + $0x20] sm:$0xf]
    %v167 = vld [vmem:[#allocation2 + $0x24] sm:$0xf]
    %v168 = vld [vmem:[#allocation2 + $0x28] sm:$0xf]
    %v169 = vld [vmem:[#allocation2 + $0x2c] sm:$0xf]
    %v170 = vld [vmem:[#allocation2 + $0x30] sm:$0xf]
    %v171 = vld [vmem:[#allocation2 + $0x34] sm:$0xf]
    %v172 = vld [vmem:[#allocation2 + $0x38] sm:$0xf]
    %v173 = vld [vmem:[#allocation2 + $0x3c] sm:$0xf]
    %v174 = vld [vmem:[#allocation2 + $0x40] sm:$0xf]
    %v175 = vld [vmem:[#allocation2 + $0x44] sm:$0xf]
    %v176 = vld [vmem:[#allocation2 + $0x48] sm:$0xf]
    %v177 = vld [vmem:[#allocation2 + $0x4c] sm:$0xf]
    %v178 = vld [vmem:[#allocation2 + $0x50] sm:$0xf]
    %v179 = vld [vmem:[#allocation2 + $0x54] sm:$0xf]
    %v180 = vld [vmem:[#allocation2 + $0x58] sm:$0xf]
    %v181 = vld [vmem:[#allocation2 + $0x5c] sm:$0xf]
    %v182 = vld [vmem:[#allocation2 + $0x60] sm:$0xf]
    %v183 = vld [vmem:[#allocation2 + $0x64] sm:$0xf]
    %v184 = vld [vmem:[#allocation2 + $0x68] sm:$0xf]
    %v185 = vld [vmem:[#allocation2 + $0x6c] sm:$0xf]
    %v186 = vld [vmem:[#allocation2 + $0x70] sm:$0xf]
    %v187 = vld [vmem:[#allocation2 + $0x74] sm:$0xf]
    %v188 = vld [vmem:[#allocation2 + $0x78] sm:$0xf]
    %v189 = vld [vmem:[#allocation2 + $0x7c] sm:$0xf]
    %v190 = vld [vmem:[%s4] sm:$0x1]
    %v192 = vlaneseq
    %v193 = vshrl.u32 %v192, 7
    %v194 = vsub.s32 0, %v193
    %v195 = vrot.slane %v190, %v194
    %v229 = vunpack.c.l.b16 %v158
    %v230 = vunpack.c.l.b16 %v159
    %v231 = vunpack.c.l.b16 %v160
    %v232 = vunpack.c.l.b16 %v161
    %v233 = vunpack.c.l.b16 %v162
    %v234 = vunpack.c.l.b16 %v163
    %v235 = vunpack.c.l.b16 %v164
    %v236 = vunpack.c.l.b16 %v165
    %v237 = vunpack.c.l.b16 %v166
    %v238 = vunpack.c.l.b16 %v167
    %v239 = vunpack.c.l.b16 %v168
    %v240 = vunpack.c.l.b16 %v169
    %v241 = vunpack.c.l.b16 %v170
    %v242 = vunpack.c.l.b16 %v171
    %v243 = vunpack.c.l.b16 %v172
    %v244 = vunpack.c.l.b16 %v173
    %v245 = vunpack.c.l.b16 %v174
    %v246 = vunpack.c.l.b16 %v175
    %v247 = vunpack.c.l.b16 %v176
    %v248 = vunpack.c.l.b16 %v177
    %v249 = vunpack.c.l.b16 %v178
    %v250 = vunpack.c.l.b16 %v179
    %v251 = vunpack.c.l.b16 %v180
    %v252 = vunpack.c.l.b16 %v181
    %v253 = vunpack.c.l.b16 %v182
    %v254 = vunpack.c.l.b16 %v183
    %v255 = vunpack.c.l.b16 %v184
    %v256 = vunpack.c.l.b16 %v185
    %v257 = vunpack.c.l.b16 %v186
    %v258 = vunpack.c.l.b16 %v187
    %v259 = vunpack.c.l.b16 %v188
    %v260 = vunpack.c.l.b16 %v189
    %v261 = vpack.c.b16 %v230, %v229
    %v262 = vpack.c.b16 %v232, %v231
    %v263 = vpack.c.b16 %v234, %v233
    %v264 = vpack.c.b16 %v236, %v235
    %v265 = vpack.c.b16 %v238, %v237
    %v266 = vpack.c.b16 %v240, %v239
    %v267 = vpack.c.b16 %v242, %v241
    %v268 = vpack.c.b16 %v244, %v243
    %v269 = vpack.c.b16 %v246, %v245
    %v270 = vpack.c.b16 %v248, %v247
    %v271 = vpack.c.b16 %v250, %v249
    %v272 = vpack.c.b16 %v252, %v251
    %v273 = vpack.c.b16 %v254, %v253
    %v274 = vpack.c.b16 %v256, %v255
    %v275 = vpack.c.b16 %v258, %v257
    %v276 = vpack.c.b16 %v260, %v259
    %293 = vmatprep.subr.bf16.mxu0 0
    %294 = vmatpush1.bf16.msra.mxu0 %v261
    %295 = vmatprep.subr.bf16.mxu0 0
    %296 = vmatpush1.bf16.msra.mxu0 %v262
    %297 = vmatprep.subr.bf16.mxu0 0
    %298 = vmatpush1.bf16.msra.mxu0 %v263
    %299 = vmatprep.subr.bf16.mxu0 0
    %300 = vmatpush1.bf16.msra.mxu0 %v264
    %301 = vmatprep.subr.bf16.mxu0 0
    %302 = vmatpush1.bf16.msra.mxu0 %v265
    %303 = vmatprep.subr.bf16.mxu0 0
    %304 = vmatpush1.bf16.msra.mxu0 %v266
    %305 = vmatprep.subr.bf16.mxu0 0
    %306 = vmatpush1.bf16.msra.mxu0 %v267
    %307 = vmatprep.subr.bf16.mxu0 0
    %308 = vmatpush1.bf16.msra.mxu0 %v268
    %309 = vmatprep.subr.bf16.mxu0 0
    %310 = vmatpush1.bf16.msra.mxu0 %v269
    %311 = vmatprep.subr.bf16.mxu0 0
    %312 = vmatpush1.bf16.msra.mxu0 %v270
    %313 = vmatprep.subr.bf16.mxu0 0
    %314 = vmatpush1.bf16.msra.mxu0 %v271
    %315 = vmatprep.subr.bf16.mxu0 0
    %316 = vmatpush1.bf16.msra.mxu0 %v272
    %317 = vmatprep.subr.bf16.mxu0 0
    %318 = vmatpush1.bf16.msra.mxu0 %v273
    %319 = vmatprep.subr.bf16.mxu0 0
    %320 = vmatpush1.bf16.msra.mxu0 %v274
    %321 = vmatprep.subr.bf16.mxu0 0
    %322 = vmatpush1.bf16.msra.mxu0 %v275
    %323 = vmatprep.subr.bf16.mxu0 0
    %324 = vmatpush1.bf16.msra.mxu0 %v276
    %325 = vmatprep.mubr.bf16.mxu0 %v157
    %326 = vmatmul.mubr.bf16.gmra.mrb[0].mxu0 %v156
    %v327 = vpop.f32.mrb[0].mxu0
    %v328 = vadd.f32 %v195, %v327
    %v329 = vpop.f32.mrb[0].mxu0
    %v330 = vpop.f32.mrb[0].mxu0
    %v331 = vadd.f32 %v195, %v330
    %v332 = vpop.f32.mrb[0].mxu0
    %333 = vdwg.mxu0
    %v334 = vmax.f32 %v328, 0.0
    %v335 = vmax.f32 %v331, 0.0
    %v336 = vpack.c.bf16 %v335, %v334
    %v337 = vld [vmem:[#allocation4] sm:$0xf]
    %v338 = vld [vmem:[#allocation4 + $0x4] sm:$0xf]
    %v339 = vld [vmem:[#allocation4 + $0x8] sm:$0xf]
    %v340 = vld [vmem:[#allocation4 + $0xc] sm:$0xf]
    %v341 = vld [vmem:[#allocation4 + $0x10] sm:$0xf]
    %v342 = vld [vmem:[#allocation4 + $0x14] sm:$0xf]
    %v343 = vld [vmem:[#allocation4 + $0x18] sm:$0xf]
    %v344 = vld [vmem:[#allocation4 + $0x1c] sm:$0xf]
    %v345 = vld [vmem:[#allocation4 + $0x20] sm:$0xf]
    %v346 = vld [vmem:[#allocation4 + $0x24] sm:$0xf]
    %v347 = vld [vmem:[#allocation4 + $0x28] sm:$0xf]
    %v348 = vld [vmem:[#allocation4 + $0x2c] sm:$0xf]
    %v349 = vld [vmem:[#allocation4 + $0x30] sm:$0xf]
    %v350 = vld [vmem:[#allocation4 + $0x34] sm:$0xf]
    %v351 = vld [vmem:[#allocation4 + $0x38] sm:$0xf]
    %v352 = vld [vmem:[#allocation4 + $0x3c] sm:$0xf]
    %v353 = vld [vmem:[%s6] sm:$0x1]
    %v355 = vlaneseq
    %v356 = vshrl.u32 %v355, 7
    %v357 = vsub.s32 0, %v356
    %v358 = vrot.slane %v353, %v357
    %v376 = vunpack.c.l.b16 %v337
    %v377 = vunpack.c.l.b16 %v338
    %v378 = vunpack.c.l.b16 %v339
    %v379 = vunpack.c.l.b16 %v340
    %v380 = vunpack.c.l.b16 %v341
    %v381 = vunpack.c.l.b16 %v342
    %v382 = vunpack.c.l.b16 %v343
    %v383 = vunpack.c.l.b16 %v344
    %v384 = vunpack.c.l.b16 %v345
    %v385 = vunpack.c.l.b16 %v346
    %v386 = vunpack.c.l.b16 %v347
    %v387 = vunpack.c.l.b16 %v348
    %v388 = vunpack.c.l.b16 %v349
    %v389 = vunpack.c.l.b16 %v350
    %v390 = vunpack.c.l.b16 %v351
    %v391 = vunpack.c.l.b16 %v352
    %v392 = vpack.c.b16 %v377, %v376
    %v393 = vpack.c.b16 %v379, %v378
    %v394 = vpack.c.b16 %v381, %v380
    %v395 = vpack.c.b16 %v383, %v382
    %v396 = vpack.c.b16 %v385, %v384
    %v397 = vpack.c.b16 %v387, %v386
    %v398 = vpack.c.b16 %v389, %v388
    %v399 = vpack.c.b16 %v391, %v390
    %408 = vmatprep.subr.bf16.mxu0 0
    %409 = vmatpush1.bf16.msra.mxu0 %v392
    %410 = vmatprep.subr.bf16.mxu0 0
    %411 = vmatpush1.bf16.msra.mxu0 %v393
    %412 = vmatprep.subr.bf16.mxu0 0
    %413 = vmatpush1.bf16.msra.mxu0 %v394
    %414 = vmatprep.subr.bf16.mxu0 0
    %415 = vmatpush1.bf16.msra.mxu0 %v395
    %416 = vmatprep.subr.bf16.mxu0 0
    %417 = vmatpush1.bf16.msra.mxu0 %v396
    %418 = vmatprep.subr.bf16.mxu0 0
    %419 = vmatpush1.bf16.msra.mxu0 %v397
    %420 = vmatprep.subr.bf16.mxu0 0
    %421 = vmatpush1.bf16.msra.mxu0 %v398
    %422 = vmatprep.subr.bf16.mxu0 0
    %423 = vmatpush1.bf16.msra.mxu0 %v399
    %424 = vmatprep.subr.bf16.mxu0 0
    %425 = vmatpush1.bf16.msra.mxu0 0
    %426 = vmatprep.subr.bf16.mxu0 0
    %427 = vmatpush1.bf16.msra.mxu0 0
    %428 = vmatprep.subr.bf16.mxu0 0
    %429 = vmatpush1.bf16.msra.mxu0 0
    %430 = vmatprep.subr.bf16.mxu0 0
    %431 = vmatpush1.bf16.msra.mxu0 0
    %432 = vmatprep.subr.bf16.mxu0 0
    %433 = vmatpush1.bf16.msra.mxu0 0
    %434 = vmatprep.subr.bf16.mxu0 0
    %435 = vmatpush1.bf16.msra.mxu0 0
    %436 = vmatprep.subr.bf16.mxu0 0
    %437 = vmatpush1.bf16.msra.mxu0 0
    %438 = vmatprep.subr.bf16.mxu0 0
    %439 = vmatpush1.bf16.msra.mxu0 0
    %440 = vmatprep.mubr.bf16.mxu0 0
    %441 = vmatmul.mubr.bf16.gmra.mrb[0].mxu0 %v336
    %v442 = vpop.f32.mrb[0].mxu0
    %v443 = vadd.f32 %v358, %v442
    %v444 = vpop.f32.mrb[0].mxu0
    %v445 = vpop.f32.mrb[0].mxu0
    %v446 = vadd.f32 %v358, %v445
    %v447 = vpop.f32.mrb[0].mxu0
    %448 = vdwg.mxu0
    %v449 = vmax.f32 %v443, 0.0
    %v450 = vmax.f32 %v446, 0.0
    %v451 = vpack.c.bf16 %v450, %v449
    %v452 = vld [vmem:[#allocation6] sm:$0xf]
    %v453 = vld [vmem:[#allocation6 + $0x4] sm:$0xf]
    %v454 = vld [vmem:[#allocation6 + $0x8] sm:$0xf]
    %v455 = vld [vmem:[#allocation6 + $0xc] sm:$0xf]
    %v456 = vld [vmem:[#allocation6 + $0x10] sm:$0xf]
    %v457 = vld [vmem:[#allocation6 + $0x14] sm:$0xf]
    %v458 = vld [vmem:[#allocation6 + $0x18] sm:$0xf]
    %v459 = vld [vmem:[#allocation6 + $0x1c] sm:$0xf]
    %v460 = vld [vmem:[#allocation6 + $0x20] sm:$0xf]
    %v461 = vld [vmem:[#allocation6 + $0x24] sm:$0xf]
    %v462 = vld [vmem:[#allocation6 + $0x28] sm:$0xf]
    %v463 = vld [vmem:[#allocation6 + $0x2c] sm:$0xf]
    %v464 = vld [vmem:[#allocation6 + $0x30] sm:$0xf]
    %v465 = vld [vmem:[#allocation6 + $0x34] sm:$0xf]
    %v466 = vld [vmem:[#allocation6 + $0x38] sm:$0xf]
    %v467 = vld [vmem:[#allocation6 + $0x3c] sm:$0xf]
    %v468 = vld [vmem:[%s8] sm:$0x1]
    %v470 = vlaneseq
    %v471 = vshrl.u32 %v470, 7
    %v472 = vsub.s32 0, %v471
    %v473 = vrot.slane %v468, %v472
    %v491 = vunpack.c.l.b16 %v452
    %v492 = vunpack.c.l.b16 %v453
    %v493 = vunpack.c.l.b16 %v454
    %v494 = vunpack.c.l.b16 %v455
    %v495 = vunpack.c.l.b16 %v456
    %v496 = vunpack.c.l.b16 %v457
    %v497 = vunpack.c.l.b16 %v458
    %v498 = vunpack.c.l.b16 %v459
    %v499 = vunpack.c.l.b16 %v460
    %v500 = vunpack.c.l.b16 %v461
    %v501 = vunpack.c.l.b16 %v462
    %v502 = vunpack.c.l.b16 %v463
    %v503 = vunpack.c.l.b16 %v464
    %v504 = vunpack.c.l.b16 %v465
    %v505 = vunpack.c.l.b16 %v466
    %v506 = vunpack.c.l.b16 %v467
    %v507 = vpack.c.b16 %v492, %v491
    %v508 = vpack.c.b16 %v494, %v493
    %v509 = vpack.c.b16 %v496, %v495
    %v510 = vpack.c.b16 %v498, %v497
    %v511 = vpack.c.b16 %v500, %v499
    %v512 = vpack.c.b16 %v502, %v501
    %v513 = vpack.c.b16 %v504, %v503
    %v514 = vpack.c.b16 %v506, %v505
    %523 = vmatprep.subr.bf16.mxu0 0
    %524 = vmatpush1.bf16.msra.mxu0 %v507
    %525 = vmatprep.subr.bf16.mxu0 0
    %526 = vmatpush1.bf16.msra.mxu0 %v508
    %527 = vmatprep.subr.bf16.mxu0 0
    %528 = vmatpush1.bf16.msra.mxu0 %v509
    %529 = vmatprep.subr.bf16.mxu0 0
    %530 = vmatpush1.bf16.msra.mxu0 %v510
    %531 = vmatprep.subr.bf16.mxu0 0
    %532 = vmatpush1.bf16.msra.mxu0 %v511
    %533 = vmatprep.subr.bf16.mxu0 0
    %534 = vmatpush1.bf16.msra.mxu0 %v512
    %535 = vmatprep.subr.bf16.mxu0 0
    %536 = vmatpush1.bf16.msra.mxu0 %v513
    %537 = vmatprep.subr.bf16.mxu0 0
    %538 = vmatpush1.bf16.msra.mxu0 %v514
    %539 = vmatprep.subr.bf16.mxu0 0
    %540 = vmatpush1.bf16.msra.mxu0 0
    %541 = vmatprep.subr.bf16.mxu0 0
    %542 = vmatpush1.bf16.msra.mxu0 0
    %543 = vmatprep.subr.bf16.mxu0 0
    %544 = vmatpush1.bf16.msra.mxu0 0
    %545 = vmatprep.subr.bf16.mxu0 0
    %546 = vmatpush1.bf16.msra.mxu0 0
    %547 = vmatprep.subr.bf16.mxu0 0
    %548 = vmatpush1.bf16.msra.mxu0 0
    %549 = vmatprep.subr.bf16.mxu0 0
    %550 = vmatpush1.bf16.msra.mxu0 0
    %551 = vmatprep.subr.bf16.mxu0 0
    %552 = vmatpush1.bf16.msra.mxu0 0
    %553 = vmatprep.subr.bf16.mxu0 0
    %554 = vmatpush1.bf16.msra.mxu0 0
    %555 = vmatprep.mubr.bf16.mxu0 0
    %556 = vmatmul.mubr.bf16.gmra.mrb[0].mxu0 %v451
    %v557 = vpop.f32.mrb[0].mxu0
    %v558 = vadd.f32 %v473, %v557
    %v559 = vpop.f32.mrb[0].mxu0
    %v560 = vpop.f32.mrb[0].mxu0
    %v561 = vadd.f32 %v473, %v560
    %v562 = vpop.f32.mrb[0].mxu0
    %563 = vdwg.mxu0
    %v564 = vtanh.pop %v558
    %v565 = vtanh.pop %v561
    %v566 = vmul.f32 %v564, 2.0
    %v567 = vmul.f32 %v565, 2.0
    %v568 = vpack.c.bf16 %v567, %v566
    %v570 = vunpack.c.l.b16 %v568
    %v571 = vunpack.c.h.b16 %v568
    %v572 = vpack.c.b16 %v570, %v570
    %v573 = vpack.c.b16 %v571, %v571
    %576 = vst [vmem:[%s9] sm:$0xf] %v572
    %577 = vst [vmem:[%s9 + $0x4] sm:$0xf] %v573
    // Predicated region
    $region50: #{actor_forward.1} parent=1 // pred_check
      _
    $region51: #{actor_forward.1} parent=1 // pred_check_branch
      %579 = sbr.rel (0) target = $region53
    $region52: #{actor_forward.1} parent=1 // pred_region
      _
    $region53: #{actor_forward.1} parent=1 // pred_fallthru
      _
    // Predicated region
    $region54: #{actor_forward.1} parent=1 // pred_check
      _
    $region55: #{actor_forward.1} parent=1 // pred_check_branch
      %581 = sbr.rel (0) target = $region57
    $region56: #{actor_forward.1} parent=1 // pred_region
      _
    $region57: #{actor_forward.1} parent=1 // pred_fallthru
      _
    %582 = vsyncpa [#allocation3], 1
    %583 = vsyncpa [#allocation5], 1

</llo_original>
